<compile_context>
chip_gen: v7x
topology: tpu7x:2x2x1
jax: 0.10.0
libtpu: 0.0.40
codegen_flags: <defaults>
</compile_context>

<pallas_src>
import jax
import jax.numpy as jnp
from jax.experimental import pallas as pl
from jax.experimental.pallas import tpu as pltpu

EPS = 1e-5                 # nn.LayerNorm default eps
MXU_DTYPE = jnp.bfloat16   # bf16-native MXUs on v5e / v6e / v7x


def _round_up(a, m):
    return ((a + m - 1) // m) * m


def _vmem_budget_bytes():
    """Generation-aware scoped-VMEM budget (leave headroom for the compiler)."""
    cap = 64 * 1024 * 1024  # conservative default = v7x per-TensorCore VMEM
    try:
        info = pltpu.get_tpu_info()
        cap = int(getattr(info, "vmem_capacity_bytes", cap) or cap)
    except Exception:
        pass
    # ~48 MiB on v7x (64 MiB cap), ~96 MiB on v5e/v6e (128 MiB cap).
    return max(16 * 1024 * 1024, min(cap - 16 * 1024 * 1024, 96 * 1024 * 1024))


def _pick_row_tile(rows, per_row_bytes, budget, max_tile):
    """Row tile: multiple of 16 (bf16-safe sublanes), fits budget, >=2 tiles."""
    tm = min(max_tile, _round_up(rows, 16))
    while tm > 16 and tm * per_row_bytes > budget:
        tm = max(16, _round_up(tm // 2, 16))
    # Guarantee at least 2 row tiles so megacore ("parallel") can use both
    # v7x TensorCores whenever there is enough work.
    if rows > 16 and pl.cdiv(rows, tm) < 2:
        tm = max(16, _round_up(pl.cdiv(rows, 2), 16))
    return tm


def _pick_col_tile(dout, max_tile=512):
    for tn in (512, 256, 128):
        if tn <= max_tile and dout % tn == 0:
            return tn
    return dout


# ------------------ Fused LayerNorm + Linear kernels ------------------
def _prenorm_linear_resident_kernel(x_ref, g_ref, b_ref, w_ref, bias_ref, o_ref):
    # Whole weight is VMEM-resident (constant block index -> DMA'd once).
    x = x_ref[...].astype(jnp.float32)
    mean = jnp.mean(x, axis=-1, keepdims=True)
    xc = x - mean
    var = jnp.mean(xc * xc, axis=-1, keepdims=True)
    ln = (xc * jax.lax.rsqrt(var + EPS)) * g_ref[...] + b_ref[...]
    acc = jnp.dot(ln.astype(w_ref.dtype), w_ref[...],
                  preferred_element_type=jnp.float32)
    o_ref[...] = (acc + bias_ref[...]).astype(o_ref.dtype)


def _prenorm_linear_tiled_kernel(x_ref, g_ref, b_ref, w_ref, bias_ref, o_ref,
                                 ln_ref):
    # LN computed once per row tile (first N-tile) into bf16 VMEM scratch,
    # reused by the MXU for every weight N-tile.
    @pl.when(pl.program_id(1) == 0)
    def _():
        x = x_ref[...].astype(jnp.float32)
        mean = jnp.mean(x, axis=-1, keepdims=True)
        xc = x - mean
        var = jnp.mean(xc * xc, axis=-1, keepdims=True)
        ln = (xc * jax.lax.rsqrt(var + EPS)) * g_ref[...] + b_ref[...]
        ln_ref[...] = ln.astype(ln_ref.dtype)

    acc = jnp.dot(ln_ref[...], w_ref[...], preferred_element_type=jnp.float32)
    o_ref[...] = (acc + bias_ref[...]).astype(o_ref.dtype)


def prenorm_linear(x, gamma, beta, w, bias, *, force_tiled=False,
                   max_col_tile=512):
    """Fused fn(LayerNorm(x)) for fn = Linear(w, bias). x: (B, N, D)."""
    orig_dtype = x.dtype
    B, N, D = x.shape
    Dout = w.shape[1]
    rows = B * N
    x2 = x.reshape(rows, D)

    budget = _vmem_budget_bytes()

    # Lane-dense output: pad Dout (weight/bias only, once) to a multiple of 128.
    Dout_p = _round_up(Dout, 128)
    w_mx = w.astype(MXU_DTYPE)
    bias_p = bias
    if Dout_p != Dout:
        w_mx = jnp.pad(w_mx, ((0, 0), (0, Dout_p - Dout)))
        bias_p = jnp.pad(bias_p, (0, Dout_p - Dout))
    g = gamma.astype(jnp.float32).reshape(1, D)
    bln = beta.astype(jnp.float32).reshape(1, D)
    blin = bias_p.astype(jnp.float32).reshape(1, Dout_p)

    x_bpe = x2.dtype.itemsize
    o_bpe = jnp.dtype(orig_dtype).itemsize
    mx_bpe = jnp.dtype(MXU_DTYPE).itemsize
    w_bytes = D * Dout_p * mx_bpe
    resident = (not force_tiled) and (2 * w_bytes <= budget // 2)

    if resident:
        # VMEM/row-tile: 2x x (double-buffered) + 2x out (double-buffered).
        per_row = 2 * D * x_bpe + 2 * Dout_p * o_bpe
        tm = _pick_row_tile(rows, per_row, budget - 2 * w_bytes, max_tile=512)
        out = pl.pallas_call(
            _prenorm_linear_resident_kernel,
            out_shape=jax.ShapeDtypeStruct((rows, Dout_p), orig_dtype),
            grid=(pl.cdiv(rows, tm),),
            in_specs=[
                pl.BlockSpec((tm, D), lambda i: (i, 0)),        # x row tile
                pl.BlockSpec((1, D), lambda i: (0, 0)),         # gamma
                pl.BlockSpec((1, D), lambda i: (0, 0)),         # beta
                pl.BlockSpec((D, Dout_p), lambda i: (0, 0)),    # weight: resident
                pl.BlockSpec((1, Dout_p), lambda i: (0, 0)),    # bias
            ],
            out_specs=pl.BlockSpec((tm, Dout_p), lambda i: (i, 0)),
            compiler_params=pltpu.CompilerParams(
                dimension_semantics=("parallel",),
                vmem_limit_bytes=budget,
            ),
        )(x2, g, bln, w_mx, blin)
    else:
        tn = _pick_col_tile(Dout_p, max_col_tile)
        w_tile_bytes = D * tn * mx_bpe
        per_row = 2 * D * x_bpe + 2 * tn * o_bpe + D * mx_bpe  # x dbuf + out dbuf + LN scratch
        tm = _pick_row_tile(rows, per_row,
                            max(budget - 2 * w_tile_bytes, 8 * 1024 * 1024),
                            max_tile=256)
        out = pl.pallas_call(
            _prenorm_linear_tiled_kernel,
            out_shape=jax.ShapeDtypeStruct((rows, Dout_p), orig_dtype),
            grid=(pl.cdiv(rows, tm), Dout_p // tn),
            in_specs=[
                pl.BlockSpec((tm, D), lambda i, j: (i, 0)),
                pl.BlockSpec((1, D), lambda i, j: (0, 0)),
                pl.BlockSpec((1, D), lambda i, j: (0, 0)),
                pl.BlockSpec((D, tn), lambda i, j: (0, j)),
                pl.BlockSpec((1, tn), lambda i, j: (0, j)),
            ],
            out_specs=pl.BlockSpec((tm, tn), lambda i, j: (i, j)),
            scratch_shapes=[pltpu.VMEM((tm, D), MXU_DTYPE)],    # LN(x), bf16
            compiler_params=pltpu.CompilerParams(
                dimension_semantics=("parallel", "arbitrary"),
                vmem_limit_bytes=budget,
            ),
        )(x2, g, bln, w_mx, blin)

    if Dout_p != Dout:
        out = out[:, :Dout]
    return out.reshape(B, N, Dout)


# ------------------ Standalone LayerNorm (generic fn path) ------------------
def _layernorm_kernel(x_ref, g_ref, b_ref, o_ref):
    x = x_ref[...].astype(jnp.float32)
    mean = jnp.mean(x, axis=-1, keepdims=True)
    xc = x - mean
    var = jnp.mean(xc * xc, axis=-1, keepdims=True)
    o_ref[...] = (xc * jax.lax.rsqrt(var + EPS) * g_ref[...]
                  + b_ref[...]).astype(o_ref.dtype)


def layernorm(x, gamma, beta):
    B, N, D = x.shape
    rows = B * N
    x2 = x.reshape(rows, D)
    budget = _vmem_budget_bytes()
    bpe = x2.dtype.itemsize
    per_row = 2 * D * bpe + 2 * D * bpe        # x + out, double-buffered
    tm = _pick_row_tile(rows, per_row, budget, max_tile=1024)  # mem-bound: big tiles
    g = gamma.astype(jnp.float32).reshape(1, D)
    b = beta.astype(jnp.float32).reshape(1, D)
    out = pl.pallas_call(
        _layernorm_kernel,
        out_shape=jax.ShapeDtypeStruct((rows, D), x.dtype),
        grid=(pl.cdiv(rows, tm),),
        in_specs=[
            pl.BlockSpec((tm, D), lambda i: (i, 0)),
            pl.BlockSpec((1, D), lambda i: (0, 0)),
            pl.BlockSpec((1, D), lambda i: (0, 0)),
        ],
        out_specs=pl.BlockSpec((tm, D), lambda i: (i, 0)),
        compiler_params=pltpu.CompilerParams(
            dimension_semantics=("parallel",),
            vmem_limit_bytes=budget,
        ),
    )(x2, g, b)
    return out.reshape(B, N, D)


# ------------------ Standalone Linear (used outside the fused path) ------------------
def _linear_kernel(x_ref, w_ref, b_ref, o_ref):
    acc = jnp.dot(x_ref[...].astype(w_ref.dtype), w_ref[...],
                  preferred_element_type=jnp.float32)
    o_ref[...] = (acc + b_ref[...]).astype(o_ref.dtype)


def linear(x, w, bias):
    orig_dtype = x.dtype
    B, N, D = x.shape
    Dout = w.shape[1]
    rows = B * N
    x2 = x.reshape(rows, D)
    budget = _vmem_budget_bytes()

    Dout_p = _round_up(Dout, 128)
    w_mx = w.astype(MXU_DTYPE)
    bias_p = bias
    if Dout_p != Dout:
        w_mx = jnp.pad(w_mx, ((0, 0), (0, Dout_p - Dout)))
        bias_p = jnp.pad(bias_p, (0, Dout_p - Dout))
    b2 = bias_p.astype(jnp.float32).reshape(1, Dout_p)

    x_bpe = x2.dtype.itemsize
    o_bpe = jnp.dtype(orig_dtype).itemsize
    mx_bpe = jnp.dtype(MXU_DTYPE).itemsize
    w_bytes = D * Dout_p * mx_bpe
    resident = 2 * w_bytes <= budget // 2

    if resident:
        per_row = 2 * D * x_bpe + 2 * Dout_p * o_bpe
        tm = _pick_row_tile(rows, per_row, budget - 2 * w_bytes, max_tile=512)
        out = pl.pallas_call(
            _linear_kernel,
            out_shape=jax.ShapeDtypeStruct((rows, Dout_p), orig_dtype),
            grid=(pl.cdiv(rows, tm),),
            in_specs=[
                pl.BlockSpec((tm, D), lambda i: (i, 0)),
                pl.BlockSpec((D, Dout_p), lambda i: (0, 0)),   # resident weight
                pl.BlockSpec((1, Dout_p), lambda i: (0, 0)),
            ],
            out_specs=pl.BlockSpec((tm, Dout_p), lambda i: (i, 0)),
            compiler_params=pltpu.CompilerParams(
                dimension_semantics=("parallel",),
                vmem_limit_bytes=budget,
            ),
        )(x2, w_mx, b2)
    else:
        tn = _pick_col_tile(Dout_p)
        w_tile_bytes = D * tn * mx_bpe
        per_row = 2 * D * x_bpe + 2 * tn * o_bpe
        tm = _pick_row_tile(rows, per_row,
                            max(budget - 2 * w_tile_bytes, 8 * 1024 * 1024),
                            max_tile=256)
        out = pl.pallas_call(
            _linear_kernel,
            out_shape=jax.ShapeDtypeStruct((rows, Dout_p), orig_dtype),
            grid=(pl.cdiv(rows, tm), Dout_p // tn),
            in_specs=[
                pl.BlockSpec((tm, D), lambda i, j: (i, 0)),
                pl.BlockSpec((D, tn), lambda i, j: (0, j)),
                pl.BlockSpec((1, tn), lambda i, j: (0, j)),
            ],
            out_specs=pl.BlockSpec((tm, tn), lambda i, j: (i, j)),
            compiler_params=pltpu.CompilerParams(
                dimension_semantics=("parallel", "arbitrary"),
                vmem_limit_bytes=budget,
            ),
        )(x2, w_mx, b2)

    if Dout_p != Dout:
        out = out[:, :Dout]
    return out.reshape(B, N, Dout)


# ------------------ PreNorm module (JAX / Pallas) ------------------
class Linear:
    """Example wrapped fn (y @ w + b); enables the fused PreNorm fast path."""

    def __init__(self, w, b):
        self.w = w
        self.b = b

    def __call__(self, y):
        return linear(y, self.w, self.b)


class PreNorm:
    """Equivalent of: self.norm = nn.LayerNorm(dim); forward(x) = fn(norm(x), **kwargs)."""

    def __init__(self, dim, fn):
        self.dim = dim
        self.fn = fn
        # nn.LayerNorm default init: weight = ones, bias = zeros
        self.gamma = jnp.ones((dim,), jnp.float32)
        self.beta = jnp.zeros((dim,), jnp.float32)

    def __call__(self, x, **kwargs):
        if isinstance(self.fn, Linear) and not kwargs:
            # Fused LayerNorm + Linear: normalized activations never leave VMEM.
            return prenorm_linear(x, self.gamma, self.beta, self.fn.w, self.fn.b)
        # Generic fn: Pallas LayerNorm, then call fn on the result.
        return self.fn(layernorm(x, self.gamma, self.beta), **kwargs)


if __name__ == "__main__":
    # bf16 MXU inputs => looser tolerances than an all-f32 reference.
    TOL = dict(atol=2e-2, rtol=2e-2)

    # --- Test 1: toy ViT-style shapes (batch=2, seq=8, hidden=32), fused resident path ---
    B, N, D = 2, 8, 32
    key = jax.random.PRNGKey(0)
    kx, kw, kb = jax.random.split(key, 3)
    x = jax.random.normal(kx, (B, N, D), jnp.float32)
    w = jax.random.normal(kw, (D, D), jnp.float32) * 0.02
    b = jax.random.normal(kb, (D,), jnp.float32) * 0.02

    prenorm = PreNorm(D, Linear(w, b))
    out = jax.block_until_ready(prenorm(x))

    mean = jnp.mean(x, axis=-1, keepdims=True)
    var = jnp.mean((x - mean) ** 2, axis=-1, keepdims=True)
    ln_ref = (x - mean) / jnp.sqrt(var + EPS) * prenorm.gamma + prenorm.beta
    ref = jnp.dot(ln_ref, w, precision=jax.lax.Precision.HIGHEST) + b
    assert out.shape == (B, N, D)
    assert jnp.allclose(out, ref, **TOL)

    # --- Test 2: non-divisible rows, padded Dout path, >=2 row tiles ---
    B2, N2, D2, Dout2 = 3, 100, 128, 512
    k2 = jax.random.split(jax.random.PRNGKey(0), 5)
    x2 = jax.random.normal(k2[0], (B2, N2, D2), jnp.float32)
    w2 = jax.random.normal(k2[1], (D2, Dout2), jnp.float32) * 0.02
    b2 = jax.random.normal(k2[2], (Dout2,), jnp.float32) * 0.02
    g2 = 1.0 + 0.1 * jax.random.normal(k2[3], (D2,), jnp.float32)
    be2 = 0.1 * jax.random.normal(k2[4], (D2,), jnp.float32)
    pn2 = PreNorm(D2, Linear(w2, b2))
    pn2.gamma, pn2.beta = g2, be2
    out2 = jax.block_until_ready(pn2(x2))
    mean2 = jnp.mean(x2, axis=-1, keepdims=True)
    var2 = jnp.mean((x2 - mean2) ** 2, axis=-1, keepdims=True)
    ln2 = (x2 - mean2) / jnp.sqrt(var2 + EPS) * g2 + be2
    ref2 = jnp.dot(ln2, w2, precision=jax.lax.Precision.HIGHEST) + b2
    assert out2.shape == (B2, N2, Dout2)
    assert jnp.allclose(out2, ref2, **TOL)

    # --- Test 3: generic (non-Linear) fn exercises the standalone LayerNorm kernel ---
    pn3 = PreNorm(D, lambda y: jax.nn.gelu(y))
    out3 = jax.block_until_ready(pn3(x))
    ln3 = (x - mean) / jnp.sqrt(var + EPS)  # gamma=1, beta=0 defaults
    assert jnp.allclose(out3, jax.nn.gelu(ln3), atol=1e-4, rtol=1e-4)

    # --- Test 4: force the tiled (big-weight) fused path with multiple N-tiles ---
    out4 = jax.block_until_ready(
        prenorm_linear(x2, g2, be2, w2, b2, force_tiled=True, max_col_tile=128))
    assert jnp.allclose(out4, ref2, **TOL)

    # --- Test 5: standalone linear kernel ---
    out5 = jax.block_until_ready(linear(ln_ref, w, b))
    ref5 = jnp.dot(ln_ref, w, precision=jax.lax.Precision.HIGHEST) + b
    assert jnp.allclose(out5, ref5, **TOL)

    print("KERNEL_OK")
</pallas_src>

<mosaic_0001>
module attributes {stable_mosaic.version = 11 : i64} {
  func.func @_prenorm_linear_resident_kernel(%arg0: i32, %arg1: memref<16x32xf32, #tpu.memory_space<vmem>>, %arg2: memref<1x32xf32, #tpu.memory_space<vmem>>, %arg3: memref<1x32xf32, #tpu.memory_space<vmem>>, %arg4: memref<32x128xbf16, #tpu.memory_space<vmem>>, %arg5: memref<1x128xf32, #tpu.memory_space<vmem>>, %arg6: memref<16x128xf32, #tpu.memory_space<vmem>>) attributes {dimension_semantics = [#tpu.dimension_semantics<parallel>], iteration_bounds = array<i64: 1>, scalar_prefetch = 0 : i64, scratch_operands = 0 : i64, tpu.core_type = #tpu.core_type<tc>, window_params = [{transform_indices = @transform_0, window_bounds = array<i64: 16, 32>}, {pipeline_mode = #tpu.pipeline_mode<synchronous>, transform_indices = @transform_1, window_bounds = array<i64: 1, 32>}, {pipeline_mode = #tpu.pipeline_mode<synchronous>, transform_indices = @transform_2, window_bounds = array<i64: 1, 32>}, {pipeline_mode = #tpu.pipeline_mode<synchronous>, transform_indices = @transform_3, window_bounds = array<i64: 32, 128>}, {pipeline_mode = #tpu.pipeline_mode<synchronous>, transform_indices = @transform_4, window_bounds = array<i64: 1, 128>}, {transform_indices = @transform_5, window_bounds = array<i64: 16, 128>}]} {
    %c0 = arith.constant 0 : index
    %c0_0 = arith.constant 0 : index
    %0 = vector.load %arg1[%c0, %c0_0] : memref<16x32xf32, #tpu.memory_space<vmem>>, vector<16x32xf32>
    %cst = arith.constant dense<0.000000e+00> : vector<16xf32>
    %1 = vector.multi_reduction <add>, %0, %cst [1] : vector<16x32xf32> to vector<16xf32>
    %2 = vector.shape_cast %1 : vector<16xf32> to vector<16x1xf32>
    %cst_1 = arith.constant 3.200000e+01 : f32
    %3 = vector.broadcast %cst_1 : f32 to vector<16x1xf32>
    %4 = arith.divf %2, %3 : vector<16x1xf32>
    %5 = vector.broadcast %4 : vector<16x1xf32> to vector<16x32xf32>
    %6 = arith.subf %0, %5 : vector<16x32xf32>
    %7 = arith.mulf %6, %6 : vector<16x32xf32>
    %cst_2 = arith.constant dense<0.000000e+00> : vector<16xf32>
    %8 = vector.multi_reduction <add>, %7, %cst_2 [1] : vector<16x32xf32> to vector<16xf32>
    %9 = vector.shape_cast %8 : vector<16xf32> to vector<16x1xf32>
    %cst_3 = arith.constant 3.200000e+01 : f32
    %10 = vector.broadcast %cst_3 : f32 to vector<16x1xf32>
    %11 = arith.divf %9, %10 : vector<16x1xf32>
    %cst_4 = arith.constant 9.99999974E-6 : f32
    %12 = vector.broadcast %cst_4 : f32 to vector<16x1xf32>
    %13 = arith.addf %11, %12 : vector<16x1xf32>
    %14 = math.rsqrt %13 : vector<16x1xf32>
    %15 = vector.broadcast %14 : vector<16x1xf32> to vector<16x32xf32>
    %16 = arith.mulf %6, %15 : vector<16x32xf32>
    %c0_5 = arith.constant 0 : index
    %c0_6 = arith.constant 0 : index
    %17 = vector.load %arg2[%c0_5, %c0_6] : memref<1x32xf32, #tpu.memory_space<vmem>>, vector<1x32xf32>
    %18 = vector.broadcast %17 : vector<1x32xf32> to vector<16x32xf32>
    %19 = arith.mulf %16, %18 : vector<16x32xf32>
    %c0_7 = arith.constant 0 : index
    %c0_8 = arith.constant 0 : index
    %20 = vector.load %arg3[%c0_7, %c0_8] : memref<1x32xf32, #tpu.memory_space<vmem>>, vector<1x32xf32>
    %21 = vector.broadcast %20 : vector<1x32xf32> to vector<16x32xf32>
    %22 = arith.addf %19, %21 : vector<16x32xf32>
    %23 = arith.truncf %22 : vector<16x32xf32> to vector<16x32xbf16>
    %c0_9 = arith.constant 0 : index
    %c0_10 = arith.constant 0 : index
    %24 = vector.load %arg4[%c0_9, %c0_10] : memref<32x128xbf16, #tpu.memory_space<vmem>>, vector<32x128xbf16>
    %cst_11 = arith.constant dense<0.000000e+00> : vector<16x128xf32>
    %25 = tpu.matmul %23, %24, %cst_11 {dimension_numbers = #tpu.dot_dimension_numbers<[1], [0], [0], [1], [0, 0, 1, 1], [], []>} : vector<16x32xbf16>, vector<32x128xbf16>, vector<16x128xf32> -> vector<16x128xf32>
    %c0_12 = arith.constant 0 : index
    %c0_13 = arith.constant 0 : index
    %26 = vector.load %arg5[%c0_12, %c0_13] : memref<1x128xf32, #tpu.memory_space<vmem>>, vector<1x128xf32>
    %27 = vector.broadcast %26 : vector<1x128xf32> to vector<16x128xf32>
    %28 = arith.addf %25, %27 : vector<16x128xf32>
    %c0_14 = arith.constant 0 : index
    %c0_15 = arith.constant 0 : index
    %29 = vector.load %arg6[%c0_14, %c0_15] : memref<16x128xf32, #tpu.memory_space<vmem>>, vector<16x128xf32>
    tpu.vector_store %arg6[%c0_14, %c0_15], %28 {strides = array<i32>} : memref<16x128xf32, #tpu.memory_space<vmem>>, vector<16x128xf32>,
    return
  }
  func.func @transform_0(%arg0: i32) -> (i32, i32) {
    %c0_i32 = arith.constant 0 : i32
    %c0_i32_0 = arith.constant 0 : i32
    return %arg0, %c0_i32 : i32, i32
  }
  func.func @transform_1(%arg0: i32) -> (i32, i32) {
    %c0_i32 = arith.constant 0 : i32
    %c0_i32_0 = arith.constant 0 : i32
    %c0_i32_1 = arith.constant 0 : i32
    return %c0_i32, %c0_i32_0 : i32, i32
  }
  func.func @transform_2(%arg0: i32) -> (i32, i32) {
    %c0_i32 = arith.constant 0 : i32
    %c0_i32_0 = arith.constant 0 : i32
    %c0_i32_1 = arith.constant 0 : i32
    return %c0_i32, %c0_i32_0 : i32, i32
  }
  func.func @transform_3(%arg0: i32) -> (i32, i32) {
    %c0_i32 = arith.constant 0 : i32
    %c0_i32_0 = arith.constant 0 : i32
    %c0_i32_1 = arith.constant 0 : i32
    return %c0_i32, %c0_i32_0 : i32, i32
  }
  func.func @transform_4(%arg0: i32) -> (i32, i32) {
    %c0_i32 = arith.constant 0 : i32
    %c0_i32_0 = arith.constant 0 : i32
    %c0_i32_1 = arith.constant 0 : i32
    return %c0_i32, %c0_i32_0 : i32, i32
  }
  func.func @transform_5(%arg0: i32) -> (i32, i32) {
    %c0_i32 = arith.constant 0 : i32
    %c0_i32_0 = arith.constant 0 : i32
    return %arg0, %c0_i32 : i32, i32
  }
}

</mosaic_0001>

<llo_original>
// kernel: tpu_custom_call.1
$region0: #{tpu_custom_call.1}
  #allocation0 [shape = 'u32[]', space=smem, size = 0x4, offset = 0x4, fixed_abs, tag = 'smem constant byte address 0x4 - core index']
  #allocation1 [shape = 'u32[144,128]{1,0:T(1,128)}', space=vmem, size = 0x12000, scoped, tag = 'internal scratch']
  %s0 = inlined_call_operand.hbm [shape: f32[16,32], index: 0, kind: input, shape index: {}]
  %s1 = inlined_call_operand.vmem [shape: f32[1,32], index: 1, kind: input, shape index: {}]
  %s2 = inlined_call_operand.vmem [shape: f32[1,32], index: 2, kind: input, shape index: {}]
  %s3 = inlined_call_operand.hbm [shape: bf16[32,128], index: 3, kind: input, shape index: {}]
  %s4 = inlined_call_operand.vmem [shape: f32[1,128], index: 4, kind: input, shape index: {}]
  %s5 = inlined_call_operand.hbm [shape: f32[16,128], index: 5, kind: output, shape index: {}]
  %s6 = sld [smem:[#allocation0]]
  $region38: #{tpu_custom_call.1} parent=0
    _
  %s8 = ssub.s32 1, %s6
  %s9 = scalar_select 0, %s8, %s6
  $region1: #{tpu_custom_call.1} parent=0
    #allocation2 [shape = 'u8[8192]{0}', space=vmem, size = 0x2000, scoped, tag = 'input window, operand 0, single buffered']
    #allocation3 [shape = 's32[1]{0}', space=sflag, size = 0x4, scoped, tag = 'scoped memory for tpu_custom_call.1']
    #allocation4 [shape = 's32[1]{0}', space=sflag, size = 0x4, scoped, tag = 'scoped memory for tpu_custom_call.1']
    #allocation5 [shape = 'u8[8192]{0}', space=vmem, size = 0x2000, scoped, tag = 'input window, operand 3, single buffered']
    #allocation6 [shape = 's32[1]{0}', space=sflag, size = 0x4, scoped, tag = 'scoped memory for tpu_custom_call.1']
    #allocation7 [shape = 'u8[8192]{0}', space=vmem, size = 0x2000, scoped, tag = 'output window, operand 0, single buffered']
    %10 = vsyncpa [#allocation3], 0
    %11 = vsyncpa [#allocation6], 0
    %12 = vsyncpa [#allocation4], 0
    // Predicated region
    $region2: #{tpu_custom_call.1} parent=1 // pred_check
      _
    $region3: #{tpu_custom_call.1} parent=1 // pred_check_branch
      %14 = sbr.rel (0) target = $region5
    $region4: #{tpu_custom_call.1} parent=1 // pred_region
      %s16 = ssub.s32 256, 256
      %17 = vsyncadd [#allocation3], %s16
      %s18 = sshll.u32 [#allocation2], 4
      %s19 = int_to_ptr.vmem [resolvable:$true] %s18
      %24 = dma.hbm_to_vmem [thread:$0]  %s0, 256, %s19, [#allocation3], 128, 128, 8
    $region5: #{tpu_custom_call.1} parent=1 // pred_fallthru
      _
    // Predicated region
    $region6: #{tpu_custom_call.1} parent=1 // pred_check
      _
    $region7: #{tpu_custom_call.1} parent=1 // pred_check_branch
      %26 = sbr.rel (0) target = $region9
    $region8: #{tpu_custom_call.1} parent=1 // pred_region
      _
    $region9: #{tpu_custom_call.1} parent=1 // pred_fallthru
      _
    // Predicated region
    $region10: #{tpu_custom_call.1} parent=1 // pred_check
      _
    $region11: #{tpu_custom_call.1} parent=1 // pred_check_branch
      %28 = sbr.rel (0) target = $region13
    $region12: #{tpu_custom_call.1} parent=1 // pred_region
      _
    $region13: #{tpu_custom_call.1} parent=1 // pred_fallthru
      _
    // Predicated region
    $region14: #{tpu_custom_call.1} parent=1 // pred_check
      _
    $region15: #{tpu_custom_call.1} parent=1 // pred_check_branch
      %30 = sbr.rel (0) target = $region17
    $region16: #{tpu_custom_call.1} parent=1 // pred_region
      %s32 = ssub.s32 256, 256
      %33 = vsyncadd [#allocation6], %s32
      %s34 = sshll.u32 [#allocation5], 4
      %s35 = int_to_ptr.vmem [resolvable:$true] %s34
      %40 = dma.hbm_to_vmem [thread:$0]  %s3, 256, %s35, [#allocation6], 64, 64, 4
    $region17: #{tpu_custom_call.1} parent=1 // pred_fallthru
      _
    // Predicated region
    $region18: #{tpu_custom_call.1} parent=1 // pred_check
      _
    $region19: #{tpu_custom_call.1} parent=1 // pred_check_branch
      %42 = sbr.rel (0) target = $region21
    $region20: #{tpu_custom_call.1} parent=1 // pred_region
      _
    $region21: #{tpu_custom_call.1} parent=1 // pred_fallthru
      _
    // Predicated region
    $region22: #{tpu_custom_call.1} parent=1 // pred_check
      _
    $region23: #{tpu_custom_call.1} parent=1 // pred_check_branch
      %44 = sbr.rel (0) target = $region25
    $region24: #{tpu_custom_call.1} parent=1 // pred_region
      %45 = dma.done [#allocation3], 256
    $region25: #{tpu_custom_call.1} parent=1 // pred_fallthru
      _
    // Predicated region
    $region26: #{tpu_custom_call.1} parent=1 // pred_check
      _
    $region27: #{tpu_custom_call.1} parent=1 // pred_check_branch
      %47 = sbr.rel (0) target = $region29
    $region28: #{tpu_custom_call.1} parent=1 // pred_region
      %48 = dma.done [#allocation6], 256
    $region29: #{tpu_custom_call.1} parent=1 // pred_fallthru
      _
    %v50 = vld [vmem:[#allocation2] sm:$0xff]
    %v51 = vld [vmem:[#allocation2 + $0x8] sm:$0xff]
    %vm52 = vcmask 261120
    %v53 = vsel %vm52, %v50, 0.0
    %54 = vadd.xlane.f32.xlu0 %v53
    %v55 = vpop.xlane.xlu0 %54
    %v56 = vsel %vm52, %v51, 0.0
    %57 = vadd.xlane.f32.xlu0 %v56
    %v58 = vpop.xlane.xlu0 %57
    %v59 = vrcp.pop 32.0
    %v60 = vmul.f32 %v55, %v59
    %v61 = vmul.f32 %v58, %v59
    %v62 = vsub.f32 %v50, %v60
    %v63 = vsub.f32 %v51, %v61
    %v64 = vmul.f32 %v62, %v62
    %v65 = vmul.f32 %v63, %v63
    %v66 = vsel %vm52, %v64, 0.0
    %67 = vadd.xlane.f32.xlu0 %v66
    %v68 = vpop.xlane.xlu0 %67
    %v69 = vsel %vm52, %v65, 0.0
    %70 = vadd.xlane.f32.xlu0 %v69
    %v71 = vpop.xlane.xlu0 %70
    %v72 = vmul.f32 %v68, %v59
    %v73 = vmul.f32 %v71, %v59
    %v74 = vadd.f32 %v72, 1e-05
    %v75 = vadd.f32 %v73, 1e-05
    %v76 = vrsqrt.pop %v74
    %v77 = vrsqrt.pop %v75
    %v78 = vmul.f32 %v62, %v76
    %v79 = vmul.f32 %v63, %v77
    %v80 = vld [vmem:[%s1] sm:$0x1]
    %v82 = vlaneseq
    %v83 = vshrl.u32 %v82, 7
    %v84 = vsub.s32 0, %v83
    %v85 = vrot.slane %v80, %v84
    %v87 = vmul.f32 %v78, %v85
    %v88 = vmul.f32 %v79, %v85
    %v89 = vld [vmem:[%s2] sm:$0x1]
    %v91 = vlaneseq
    %v92 = vshrl.u32 %v91, 7
    %v93 = vsub.s32 0, %v92
    %v94 = vrot.slane %v89, %v93
    %v96 = vadd.f32 %v87, %v94
    %v97 = vadd.f32 %v88, %v94
    %v98 = vpack.c.bf16 %v97, %v96
    %v99 = vld [vmem:[#allocation5] sm:$0xf]
    %v100 = vld [vmem:[#allocation5 + $0x4] sm:$0xf]
    %v101 = vld [vmem:[#allocation5 + $0x8] sm:$0xf]
    %v102 = vld [vmem:[#allocation5 + $0xc] sm:$0xf]
    %v103 = vld [vmem:[%s4] sm:$0x1]
    %v105 = vlaneseq
    %v106 = vshrl.u32 %v105, 7
    %v107 = vsub.s32 0, %v106
    %v108 = vrot.slane %v103, %v107
    %v114 = vunpack.c.l.b16 %v99
    %v115 = vunpack.c.l.b16 %v100
    %v116 = vunpack.c.l.b16 %v101
    %v117 = vunpack.c.l.b16 %v102
    %v118 = vpack.c.b16 %v115, %v114
    %v119 = vpack.c.b16 %v117, %v116
    %v123 = vsel %vm52, %v98, 0
    %125 = vmatprep.subr.bf16.mxu0 0
    %126 = vmatpush1.bf16.msra.mxu0 %v118
    %127 = vmatprep.subr.bf16.mxu0 0
    %128 = vmatpush1.bf16.msra.mxu0 %v119
    %129 = vmatprep.subr.bf16.mxu0 0
    %130 = vmatpush1.bf16.msra.mxu0 0
    %131 = vmatprep.subr.bf16.mxu0 0
    %132 = vmatpush1.bf16.msra.mxu0 0
    %133 = vmatprep.subr.bf16.mxu0 0
    %134 = vmatpush1.bf16.msra.mxu0 0
    %135 = vmatprep.subr.bf16.mxu0 0
    %136 = vmatpush1.bf16.msra.mxu0 0
    %137 = vmatprep.subr.bf16.mxu0 0
    %138 = vmatpush1.bf16.msra.mxu0 0
    %139 = vmatprep.subr.bf16.mxu0 0
    %140 = vmatpush1.bf16.msra.mxu0 0
    %141 = vmatprep.subr.bf16.mxu0 0
    %142 = vmatpush1.bf16.msra.mxu0 0
    %143 = vmatprep.subr.bf16.mxu0 0
    %144 = vmatpush1.bf16.msra.mxu0 0
    %145 = vmatprep.subr.bf16.mxu0 0
    %146 = vmatpush1.bf16.msra.mxu0 0
    %147 = vmatprep.subr.bf16.mxu0 0
    %148 = vmatpush1.bf16.msra.mxu0 0
    %149 = vmatprep.subr.bf16.mxu0 0
    %150 = vmatpush1.bf16.msra.mxu0 0
    %151 = vmatprep.subr.bf16.mxu0 0
    %152 = vmatpush1.bf16.msra.mxu0 0
    %153 = vmatprep.subr.bf16.mxu0 0
    %154 = vmatpush1.bf16.msra.mxu0 0
    %155 = vmatprep.subr.bf16.mxu0 0
    %156 = vmatpush1.bf16.msra.mxu0 0
    %157 = vmatprep.mubr.bf16.mxu0 0
    %158 = vmatmul.mubr.bf16.gmra.mrb[0].mxu0 %v123
    %v159 = vpop.f32.mrb[0].mxu0
    %v160 = vadd.f32 %v108, %v159
    %v161 = vpop.f32.mrb[0].mxu0
    %v162 = vpop.f32.mrb[0].mxu0
    %v163 = vadd.f32 %v108, %v162
    %v164 = vpop.f32.mrb[0].mxu0
    %165 = vdwg.mxu0
    %166 = vst [vmem:[#allocation7] sm:$0xff] %v160
    %167 = vst [vmem:[#allocation7 + $0x8] sm:$0xff] %v163
    // Predicated region
    $region30: #{tpu_custom_call.1} parent=1 // pred_check
      _
    $region31: #{tpu_custom_call.1} parent=1 // pred_check_branch
      %169 = sbr.rel (0) target = $region33
    $region32: #{tpu_custom_call.1} parent=1 // pred_region
      %s171 = ssub.s32 256, 256
      %172 = vsyncadd [#allocation4], %s171
      %s173 = sshll.u32 [#allocation7], 4
      %s174 = int_to_ptr.vmem [resolvable:$true] %s173
      %179 = dma.vmem_to_hbm [thread:$0]  %s174, 256, %s5, [#allocation4], 128, 128, 8
    $region33: #{tpu_custom_call.1} parent=1 // pred_fallthru
      _
    // Predicated region
    $region34: #{tpu_custom_call.1} parent=1 // pred_check
      _
    $region35: #{tpu_custom_call.1} parent=1 // pred_check_branch
      %181 = sbr.rel (0) target = $region37
    $region36: #{tpu_custom_call.1} parent=1 // pred_region
      %182 = dma.done [#allocation4], 256
    $region37: #{tpu_custom_call.1} parent=1 // pred_fallthru
      _
    %183 = vsyncpa [#allocation3], 1
    %184 = vsyncpa [#allocation6], 1
    %185 = vsyncpa [#allocation4], 1

</llo_original>
